<compile_context>
chip_gen: v7x
topology: tpu7x:2x2x1
jax: 0.10.0
libtpu: 0.0.40
codegen_flags: <defaults>
</compile_context>

<pallas_src>
import functools

import jax
import jax.numpy as jnp
from jax.experimental import pallas as pl
from jax.experimental.pallas import tpu as pltpu


def _silu(h):
    # SiLU(h) = h * sigmoid(h); logistic goes to the EUP (exp + reciprocal),
    # keeping the VALU slots free for the (features, TM) elementwise pass.
    return h * jax.nn.sigmoid(h)


def _fcn_kernel(xT_ref, w_in_ref, b_in_ref, w_h_ref, b_h_ref, w_out_ref,
                b_out_ref, oT_ref, *, n_hidden_layers):
    # Batch-on-lanes: x tile is (N_INPUT, TM); weights are torch-layout
    # (out_features, in_features); activations are (features, TM) in f32.
    h = jnp.dot(w_in_ref[...], xT_ref[...], preferred_element_type=jnp.float32)
    h = _silu(h + b_in_ref[...])
    # Hidden layers (static unroll — layer count is known at trace time).
    for l in range(n_hidden_layers):
        h = jnp.dot(w_h_ref[l], h.astype(w_h_ref.dtype),
                    preferred_element_type=jnp.float32)
        h = _silu(h + b_h_ref[l])
    out = jnp.dot(w_out_ref[...], h.astype(w_out_ref.dtype),
                  preferred_element_type=jnp.float32)
    oT_ref[...] = (out + b_out_ref[...]).astype(oT_ref.dtype)


def _fcn_kernel_no_hidden(xT_ref, w_in_ref, b_in_ref, w_out_ref, b_out_ref,
                          oT_ref):
    h = jnp.dot(w_in_ref[...], xT_ref[...], preferred_element_type=jnp.float32)
    h = _silu(h + b_in_ref[...])
    out = jnp.dot(w_out_ref[...], h.astype(w_out_ref.dtype),
                  preferred_element_type=jnp.float32)
    oT_ref[...] = (out + b_out_ref[...]).astype(oT_ref.dtype)


def fcn_forward(x, w_in, b_in, w_hidden, b_hidden, w_out, b_out, *,
                tile_m=4096):
    """Pallas equivalent of FCN.forward.

    Args (weights in torch nn.Linear layout, dtypes kept as given):
      x:        (N, N_INPUT) input.
      w_in:     (N_HIDDEN, N_INPUT) input-layer weight.
      b_in:     (N_HIDDEN,) input-layer bias.
      w_hidden: (N_LAYERS-1, N_HIDDEN, N_HIDDEN) stacked hidden weights,
                or None if N_LAYERS == 1.
      b_hidden: (N_LAYERS-1, N_HIDDEN) stacked hidden biases, or None.
      w_out:    (N_OUTPUT, N_HIDDEN) output-layer weight.
      b_out:    (N_OUTPUT,) output-layer bias.
    Returns:
      (N, N_OUTPUT) network output in x.dtype.
    """
    N, n_in = x.shape
    n_hidden = w_in.shape[0]
    n_out = w_out.shape[0]
    n_hid_layers = 0 if w_hidden is None else int(w_hidden.shape[0])
    out_dtype = x.dtype

    # Biases broadcast over the lane (batch) axis; activation math stays f32.
    b_in2 = b_in.reshape(n_hidden, 1).astype(jnp.float32)
    b_out2 = b_out.reshape(n_out, 1).astype(jnp.float32)

    # Batch lives on the lane axis -> tiles must be multiples of 128 lanes.
    n_lanes = max(128, pl.cdiv(N, 128) * 128)
    tm = max(128, (min(tile_m, n_lanes) // 128) * 128)
    # Guarantee >= 2 grid steps when the padded batch allows it, so the
    # "parallel" axis can shard across both TensorCores on v7x (no-op on
    # single-TC v5e/v6e).
    if n_lanes >= 2 * 128 and tm > n_lanes // 2:
        tm = max(128, (n_lanes // 2) // 128 * 128)
    n_padded = pl.cdiv(n_lanes, tm) * tm

    # Transpose so the batch dim is lane-dense; pad to a multiple of tm so
    # every block is full (unmasked stores). Padding is sliced off at the end.
    xT = x.T
    if n_padded != N:
        xT = jnp.pad(xT, ((0, 0), (0, n_padded - N)))

    grid = (n_padded // tm,)
    out_shape = jax.ShapeDtypeStruct((n_out, n_padded), out_dtype)

    if n_hid_layers > 0:
        b_h = b_hidden.reshape(n_hid_layers, n_hidden, 1).astype(jnp.float32)
        kernel = functools.partial(_fcn_kernel, n_hidden_layers=n_hid_layers)
        in_specs = [
            pl.BlockSpec((n_in, tm), lambda i: (0, i)),
            pl.BlockSpec((n_hidden, n_in), lambda i: (0, 0)),
            pl.BlockSpec((n_hidden, 1), lambda i: (0, 0)),
            pl.BlockSpec((n_hid_layers, n_hidden, n_hidden),
                         lambda i: (0, 0, 0)),
            pl.BlockSpec((n_hid_layers, n_hidden, 1), lambda i: (0, 0, 0)),
            pl.BlockSpec((n_out, n_hidden), lambda i: (0, 0)),
            pl.BlockSpec((n_out, 1), lambda i: (0, 0)),
        ]
        args = (xT, w_in, b_in2, w_hidden, b_h, w_out, b_out2)
    else:
        kernel = _fcn_kernel_no_hidden
        in_specs = [
            pl.BlockSpec((n_in, tm), lambda i: (0, i)),
            pl.BlockSpec((n_hidden, n_in), lambda i: (0, 0)),
            pl.BlockSpec((n_hidden, 1), lambda i: (0, 0)),
            pl.BlockSpec((n_out, n_hidden), lambda i: (0, 0)),
            pl.BlockSpec((n_out, 1), lambda i: (0, 0)),
        ]
        args = (xT, w_in, b_in2, w_out, b_out2)

    outT = pl.pallas_call(
        kernel,
        out_shape=out_shape,
        grid=grid,
        in_specs=in_specs,
        out_specs=pl.BlockSpec((n_out, tm), lambda i: (0, i)),
        compiler_params=pltpu.CompilerParams(
            dimension_semantics=("parallel",),
        ),
    )(*args)
    # Slice off batch padding and return in the original (N, N_OUTPUT) layout.
    return outT[:, :N].T


def _fcn_ref(x, w_in, b_in, w_hidden, b_hidden, w_out, b_out):
    """Pure-JAX reference with identical semantics to FCN.forward."""
    h = x @ w_in.T + b_in
    h = h * jax.nn.sigmoid(h)
    if w_hidden is not None:
        for l in range(w_hidden.shape[0]):
            h = h @ w_hidden[l].T + b_hidden[l]
            h = h * jax.nn.sigmoid(h)
    return h @ w_out.T + b_out


def _xavier_uniform(key, fan_out, fan_in):
    # torch nn.Linear weight layout: (out_features, in_features).
    bound = jnp.sqrt(6.0 / (fan_in + fan_out))
    return jax.random.uniform(key, (fan_out, fan_in), jnp.float32,
                              minval=-bound, maxval=bound)


if __name__ == "__main__":
    # FCN(N_INPUT=4, N_OUTPUT=3, N_HIDDEN=32, N_LAYERS=3) on a small batch.
    N_INPUT, N_OUTPUT, N_HIDDEN, N_LAYERS = 4, 3, 32, 3
    N = 200  # not a multiple of 128 -> exercises lane padding + 2-step grid

    key = jax.random.PRNGKey(0)
    keys = jax.random.split(key, 8)

    x = jax.random.normal(keys[0], (N, N_INPUT), dtype=jnp.float32)

    w_in = _xavier_uniform(keys[1], N_HIDDEN, N_INPUT)
    b_in = 0.1 * jax.random.normal(keys[2], (N_HIDDEN,), dtype=jnp.float32)

    n_hid = N_LAYERS - 1
    w_hidden = (jnp.stack([_xavier_uniform(keys[3 + l], N_HIDDEN, N_HIDDEN)
                           for l in range(n_hid)])
                if n_hid > 0 else None)
    b_hidden = (0.1 * jax.random.normal(keys[5], (n_hid, N_HIDDEN),
                                        dtype=jnp.float32)
                if n_hid > 0 else None)

    w_out = _xavier_uniform(keys[6], N_OUTPUT, N_HIDDEN)
    b_out = 0.1 * jax.random.normal(keys[7], (N_OUTPUT,), dtype=jnp.float32)

    out = fcn_forward(x, w_in, b_in, w_hidden, b_hidden, w_out, b_out)
    out = jax.block_until_ready(out)

    ref = _fcn_ref(x, w_in, b_in, w_hidden, b_hidden, w_out, b_out)
    assert out.shape == (N, N_OUTPUT)
    assert jnp.allclose(out, ref, atol=1e-5, rtol=1e-5)

    print("KERNEL_OK")
</pallas_src>

<mosaic_0001>
module attributes {stable_mosaic.version = 11 : i64} {
  func.func @_fcn_kernel(%arg0: i32, %arg1: memref<4x128xf32, #tpu.memory_space<vmem>>, %arg2: memref<32x4xf32, #tpu.memory_space<vmem>>, %arg3: memref<32x1xf32, #tpu.memory_space<vmem>>, %arg4: memref<2x32x32xf32, #tpu.memory_space<vmem>>, %arg5: memref<2x32x1xf32, #tpu.memory_space<vmem>>, %arg6: memref<3x32xf32, #tpu.memory_space<vmem>>, %arg7: memref<3x1xf32, #tpu.memory_space<vmem>>, %arg8: memref<3x128xf32, #tpu.memory_space<vmem>>) attributes {dimension_semantics = [#tpu.dimension_semantics<parallel>], iteration_bounds = array<i64: 2>, scalar_prefetch = 0 : i64, scratch_operands = 0 : i64, tpu.core_type = #tpu.core_type<tc>, window_params = [{transform_indices = @transform_0, window_bounds = array<i64: 4, 128>}, {pipeline_mode = #tpu.pipeline_mode<synchronous>, transform_indices = @transform_1, window_bounds = array<i64: 32, 4>}, {pipeline_mode = #tpu.pipeline_mode<synchronous>, transform_indices = @transform_2, window_bounds = array<i64: 32, 1>}, {pipeline_mode = #tpu.pipeline_mode<synchronous>, transform_indices = @transform_3, window_bounds = array<i64: 2, 32, 32>}, {pipeline_mode = #tpu.pipeline_mode<synchronous>, transform_indices = @transform_4, window_bounds = array<i64: 2, 32, 1>}, {pipeline_mode = #tpu.pipeline_mode<synchronous>, transform_indices = @transform_5, window_bounds = array<i64: 3, 32>}, {pipeline_mode = #tpu.pipeline_mode<synchronous>, transform_indices = @transform_6, window_bounds = array<i64: 3, 1>}, {transform_indices = @transform_7, window_bounds = array<i64: 3, 128>}]} {
    %c0 = arith.constant 0 : index
    %c0_0 = arith.constant 0 : index
    %0 = vector.load %arg2[%c0, %c0_0] : memref<32x4xf32, #tpu.memory_space<vmem>>, vector<32x4xf32>
    %c0_1 = arith.constant 0 : index
    %c0_2 = arith.constant 0 : index
    %1 = vector.load %arg1[%c0_1, %c0_2] : memref<4x128xf32, #tpu.memory_space<vmem>>, vector<4x128xf32>
    %cst = arith.constant dense<0.000000e+00> : vector<32x128xf32>
    %2 = tpu.matmul %0, %1, %cst {dimension_numbers = #tpu.dot_dimension_numbers<[1], [0], [0], [1], [0, 0, 1, 1], [], []>} : vector<32x4xf32>, vector<4x128xf32>, vector<32x128xf32> -> vector<32x128xf32>
    %c0_3 = arith.constant 0 : index
    %c0_4 = arith.constant 0 : index
    %3 = vector.load %arg3[%c0_3, %c0_4] : memref<32x1xf32, #tpu.memory_space<vmem>>, vector<32x1xf32>
    %4 = vector.broadcast %3 : vector<32x1xf32> to vector<32x128xf32>
    %5 = arith.addf %2, %4 : vector<32x128xf32>
    %6 = arith.negf %5 : vector<32x128xf32>
    %7 = math.exp %6 : vector<32x128xf32>
    %cst_5 = arith.constant 1.000000e+00 : f32
    %8 = vector.broadcast %cst_5 : f32 to vector<32x128xf32>
    %9 = arith.addf %8, %7 : vector<32x128xf32>
    %10 = arith.divf %8, %9 : vector<32x128xf32>
    %11 = arith.mulf %5, %10 : vector<32x128xf32>
    %c0_6 = arith.constant 0 : index
    %c0_7 = arith.constant 0 : index
    %c0_8 = arith.constant 0 : index
    %12 = vector.load %arg4[%c0_6, %c0_7, %c0_8] : memref<2x32x32xf32, #tpu.memory_space<vmem>>, vector<1x32x32xf32>
    %13 = vector.shape_cast %12 : vector<1x32x32xf32> to vector<32x32xf32>
    %cst_9 = arith.constant dense<0.000000e+00> : vector<32x128xf32>
    %14 = tpu.matmul %13, %11, %cst_9 {dimension_numbers = #tpu.dot_dimension_numbers<[1], [0], [0], [1], [0, 0, 1, 1], [], []>} : vector<32x32xf32>, vector<32x128xf32>, vector<32x128xf32> -> vector<32x128xf32>
    %c0_10 = arith.constant 0 : index
    %c0_11 = arith.constant 0 : index
    %c0_12 = arith.constant 0 : index
    %15 = vector.load %arg5[%c0_10, %c0_11, %c0_12] : memref<2x32x1xf32, #tpu.memory_space<vmem>>, vector<1x32x1xf32>
    %16 = vector.shape_cast %15 : vector<1x32x1xf32> to vector<32x1xf32>
    %17 = vector.broadcast %16 : vector<32x1xf32> to vector<32x128xf32>
    %18 = arith.addf %14, %17 : vector<32x128xf32>
    %19 = arith.negf %18 : vector<32x128xf32>
    %20 = math.exp %19 : vector<32x128xf32>
    %cst_13 = arith.constant 1.000000e+00 : f32
    %21 = vector.broadcast %cst_13 : f32 to vector<32x128xf32>
    %22 = arith.addf %21, %20 : vector<32x128xf32>
    %23 = arith.divf %21, %22 : vector<32x128xf32>
    %24 = arith.mulf %18, %23 : vector<32x128xf32>
    %c1 = arith.constant 1 : index
    %c0_14 = arith.constant 0 : index
    %c0_15 = arith.constant 0 : index
    %25 = vector.load %arg4[%c1, %c0_14, %c0_15] : memref<2x32x32xf32, #tpu.memory_space<vmem>>, vector<1x32x32xf32>
    %26 = vector.shape_cast %25 : vector<1x32x32xf32> to vector<32x32xf32>
    %cst_16 = arith.constant dense<0.000000e+00> : vector<32x128xf32>
    %27 = tpu.matmul %26, %24, %cst_16 {dimension_numbers = #tpu.dot_dimension_numbers<[1], [0], [0], [1], [0, 0, 1, 1], [], []>} : vector<32x32xf32>, vector<32x128xf32>, vector<32x128xf32> -> vector<32x128xf32>
    %c1_17 = arith.constant 1 : index
    %c0_18 = arith.constant 0 : index
    %c0_19 = arith.constant 0 : index
    %28 = vector.load %arg5[%c1_17, %c0_18, %c0_19] : memref<2x32x1xf32, #tpu.memory_space<vmem>>, vector<1x32x1xf32>
    %29 = vector.shape_cast %28 : vector<1x32x1xf32> to vector<32x1xf32>
    %30 = vector.broadcast %29 : vector<32x1xf32> to vector<32x128xf32>
    %31 = arith.addf %27, %30 : vector<32x128xf32>
    %32 = arith.negf %31 : vector<32x128xf32>
    %33 = math.exp %32 : vector<32x128xf32>
    %cst_20 = arith.constant 1.000000e+00 : f32
    %34 = vector.broadcast %cst_20 : f32 to vector<32x128xf32>
    %35 = arith.addf %34, %33 : vector<32x128xf32>
    %36 = arith.divf %34, %35 : vector<32x128xf32>
    %37 = arith.mulf %31, %36 : vector<32x128xf32>
    %c0_21 = arith.constant 0 : index
    %c0_22 = arith.constant 0 : index
    %38 = vector.load %arg6[%c0_21, %c0_22] : memref<3x32xf32, #tpu.memory_space<vmem>>, vector<3x32xf32>
    %cst_23 = arith.constant dense<0.000000e+00> : vector<3x128xf32>
    %39 = tpu.matmul %38, %37, %cst_23 {dimension_numbers = #tpu.dot_dimension_numbers<[1], [0], [0], [1], [0, 0, 1, 1], [], []>} : vector<3x32xf32>, vector<32x128xf32>, vector<3x128xf32> -> vector<3x128xf32>
    %c0_24 = arith.constant 0 : index
    %c0_25 = arith.constant 0 : index
    %40 = vector.load %arg7[%c0_24, %c0_25] : memref<3x1xf32, #tpu.memory_space<vmem>>, vector<3x1xf32>
    %41 = vector.broadcast %40 : vector<3x1xf32> to vector<3x128xf32>
    %42 = arith.addf %39, %41 : vector<3x128xf32>
    %c0_26 = arith.constant 0 : index
    %c0_27 = arith.constant 0 : index
    %43 = vector.load %arg8[%c0_26, %c0_27] : memref<3x128xf32, #tpu.memory_space<vmem>>, vector<3x128xf32>
    tpu.vector_store %arg8[%c0_26, %c0_27], %42 {strides = array<i32>} : memref<3x128xf32, #tpu.memory_space<vmem>>, vector<3x128xf32>,
    return
  }
  func.func @transform_0(%arg0: i32) -> (i32, i32) {
    %c0_i32 = arith.constant 0 : i32
    %c0_i32_0 = arith.constant 0 : i32
    return %c0_i32, %arg0 : i32, i32
  }
  func.func @transform_1(%arg0: i32) -> (i32, i32) {
    %c0_i32 = arith.constant 0 : i32
    %c0_i32_0 = arith.constant 0 : i32
    %c0_i32_1 = arith.constant 0 : i32
    return %c0_i32, %c0_i32_0 : i32, i32
  }
  func.func @transform_2(%arg0: i32) -> (i32, i32) {
    %c0_i32 = arith.constant 0 : i32
    %c0_i32_0 = arith.constant 0 : i32
    %c0_i32_1 = arith.constant 0 : i32
    return %c0_i32, %c0_i32_0 : i32, i32
  }
  func.func @transform_3(%arg0: i32) -> (i32, i32, i32) {
    %c0_i32 = arith.constant 0 : i32
    %c0_i32_0 = arith.constant 0 : i32
    %c0_i32_1 = arith.constant 0 : i32
    %c0_i32_2 = arith.constant 0 : i32
    return %c0_i32, %c0_i32_0, %c0_i32_1 : i32, i32, i32
  }
  func.func @transform_4(%arg0: i32) -> (i32, i32, i32) {
    %c0_i32 = arith.constant 0 : i32
    %c0_i32_0 = arith.constant 0 : i32
    %c0_i32_1 = arith.constant 0 : i32
    %c0_i32_2 = arith.constant 0 : i32
    return %c0_i32, %c0_i32_0, %c0_i32_1 : i32, i32, i32
  }
  func.func @transform_5(%arg0: i32) -> (i32, i32) {
    %c0_i32 = arith.constant 0 : i32
    %c0_i32_0 = arith.constant 0 : i32
    %c0_i32_1 = arith.constant 0 : i32
    return %c0_i32, %c0_i32_0 : i32, i32
  }
  func.func @transform_6(%arg0: i32) -> (i32, i32) {
    %c0_i32 = arith.constant 0 : i32
    %c0_i32_0 = arith.constant 0 : i32
    %c0_i32_1 = arith.constant 0 : i32
    return %c0_i32, %c0_i32_0 : i32, i32
  }
  func.func @transform_7(%arg0: i32) -> (i32, i32) {
    %c0_i32 = arith.constant 0 : i32
    %c0_i32_0 = arith.constant 0 : i32
    return %c0_i32, %arg0 : i32, i32
  }
}

</mosaic_0001>

<llo_original>
// kernel: tpu_custom_call.1
$region0: #{tpu_custom_call.1}
  #allocation0 [shape = 'u32[]', space=smem, size = 0x4, offset = 0x4, fixed_abs, tag = 'smem constant byte address 0x4 - core index']
  #allocation1 [shape = 'u32[144,128]{1,0:T(1,128)}', space=vmem, size = 0x12000, scoped, tag = 'internal scratch']
  %s0 = inlined_call_operand.vmem [shape: f32[4,256], index: 0, kind: input, shape index: {}]
  %s1 = inlined_call_operand.vmem [shape: f32[32,4], index: 1, kind: input, shape index: {}]
  %s2 = inlined_call_operand.vmem [shape: f32[32,1], index: 2, kind: input, shape index: {}]
  %s3 = inlined_call_operand.vmem [shape: f32[2,32,32], index: 3, kind: input, shape index: {}]
  %s4 = inlined_call_operand.vmem [shape: f32[2,32,1], index: 4, kind: input, shape index: {}]
  %s5 = inlined_call_operand.vmem [shape: f32[3,32], index: 5, kind: input, shape index: {}]
  %s6 = inlined_call_operand.vmem [shape: f32[3,1], index: 6, kind: input, shape index: {}]
  %s7 = inlined_call_operand.hbm [shape: f32[3,256], index: 7, kind: output, shape index: {}]
  %s8 = sld [smem:[#allocation0]]
  $region61: #{tpu_custom_call.1} parent=0
    _
  %s10 = ssub.s32 1, %s8
  %s11 = scalar_select 0, %s10, %s8
  $region1: #{tpu_custom_call.1} parent=0
    #allocation2 [shape = 'u8[4096]{0}', space=vmem, size = 0x1000, scoped, tag = 'output window, operand 0']
    #allocation3 [shape = 's32[2]{0}', space=sflag, size = 0x8, scoped, tag = 'scoped memory for tpu_custom_call.1']
    %12 = vsyncpa [#allocation3], 0
    %s13 = scalar_lea.sflag [#allocation3], 1
    %14 = vsyncpa %s13, 0
    loop: start=0, step=1, limit=4
    $region2: #{tpu_custom_call.1} parent=1 // loop_pre_header
      _
    $region3: #{tpu_custom_call.1} parent=1 // loop_header
      %s16 = sphi 0, %s20
      %p17 = scmp.ge.s32.totalorder %s16, 4
      %s26 = sphi 0, %s28
      %s29 = sphi 0, %s26
      %s30 = sphi 0, %s29
      %s46 = sphi 0, %s30
      %s50 = sphi 0, %s50
      %s52 = sphi 0, %s50
      %s53 = sphi 0, %s52
      %s67 = sphi 0, %s53
      %s71 = sphi 0, %s71
      %s73 = sphi 0, %s71
      %s74 = sphi 0, %s73
      %s88 = sphi 0, %s74
      %s92 = sphi 0, %s92
      %s94 = sphi 0, %s92
      %s95 = sphi 0, %s94
      %s109 = sphi 0, %s95
      %s113 = sphi 0, %s113
      %s115 = sphi 0, %s113
      %s116 = sphi 0, %s115
      %s130 = sphi 0, %s116
      %s134 = sphi 0, %s134
      %s136 = sphi 0, %s134
      %s137 = sphi 0, %s136
      %s151 = sphi 0, %s137
      %s155 = sphi 0, %s155
      %s157 = sphi 0, %s155
      %s158 = sphi 0, %s157
      %s172 = sphi 0, %s158
      %s178 = sphi 0, %s180
      %s181 = sphi 0, %s178
      %s182 = sphi 0, %s181
      %s198 = sphi 0, %s182
    $region4: #{tpu_custom_call.1} parent=1 // loop_header_branch
      %19 = sbr.rel (%p17) target = $region8
    $region5: #{tpu_custom_call.1} parent=1 // loop_body
      %s21 = ssub.s32 %s16, 1
      %s22 = ssub.s32 %s16, 2
      %s23 = sadd.s32 %s16, 1
      %s24 = ssub.s32 %s16, %s23
      %p25 = scmp.eq.s32.totalorder %s24, 0
      %s27 = sadd.s32 %s26, 1
      %s28 = scalar_select %p25, %s26, %s27
      %p31 = pneg %p25
      %p32 = scmp.eq.s32.totalorder %s16, 1
      %p33 = por %p31, %p32
      %p34 = scmp.ne.s32.totalorder %s26, %s29
      %p35 = scmp.eq.s32.totalorder %s16, 0
      %p36 = por %p34, %p35
      %p37 = scmp.ne.s32.totalorder %s26, %s29
      %p38 = scmp.eq.s32.totalorder %s21, 1
      %p39 = por %p37, %p38
      %p40 = scmp.ne.s32.totalorder %s29, %s30
      %p41 = scmp.eq.s32.totalorder %s21, 0
      %p42 = por %p40, %p41
      %p43 = scmp.ne.s32.totalorder %s29, %s30
      %p44 = scmp.eq.s32.totalorder %s22, 1
      %p45 = por %p43, %p44
      %p47 = scmp.ne.s32.totalorder %s30, %s46
      %p48 = scmp.eq.s32.totalorder %s22, 0
      %p49 = por %p47, %p48
      %s51 = sadd.s32 %s50, 1
      %p54 = scmp.eq.s32.totalorder %s16, 1
      %p55 = scmp.ne.s32.totalorder %s50, %s52
      %p56 = scmp.eq.s32.totalorder %s16, 0
      %p57 = por %p55, %p56
      %p58 = scmp.ne.s32.totalorder %s50, %s52
      %p59 = scmp.eq.s32.totalorder %s21, 1
      %p60 = por %p58, %p59
      %p61 = scmp.ne.s32.totalorder %s52, %s53
      %p62 = scmp.eq.s32.totalorder %s21, 0
      %p63 = por %p61, %p62
      %p64 = scmp.ne.s32.totalorder %s52, %s53
      %p65 = scmp.eq.s32.totalorder %s22, 1
      %p66 = por %p64, %p65
      %p68 = scmp.ne.s32.totalorder %s53, %s67
      %p69 = scmp.eq.s32.totalorder %s22, 0
      %p70 = por %p68, %p69
      %s72 = sadd.s32 %s71, 1
      %p75 = scmp.eq.s32.totalorder %s16, 1
      %p76 = scmp.ne.s32.totalorder %s71, %s73
      %p77 = scmp.eq.s32.totalorder %s16, 0
      %p78 = por %p76, %p77
      %p79 = scmp.ne.s32.totalorder %s71, %s73
      %p80 = scmp.eq.s32.totalorder %s21, 1
      %p81 = por %p79, %p80
      %p82 = scmp.ne.s32.totalorder %s73, %s74
      %p83 = scmp.eq.s32.totalorder %s21, 0
      %p84 = por %p82, %p83
      %p85 = scmp.ne.s32.totalorder %s73, %s74
      %p86 = scmp.eq.s32.totalorder %s22, 1
      %p87 = por %p85, %p86
      %p89 = scmp.ne.s32.totalorder %s74, %s88
      %p90 = scmp.eq.s32.totalorder %s22, 0
      %p91 = por %p89, %p90
      %s93 = sadd.s32 %s92, 1
      %p96 = scmp.eq.s32.totalorder %s16, 1
      %p97 = scmp.ne.s32.totalorder %s92, %s94
      %p98 = scmp.eq.s32.totalorder %s16, 0
      %p99 = por %p97, %p98
      %p100 = scmp.ne.s32.totalorder %s92, %s94
      %p101 = scmp.eq.s32.totalorder %s21, 1
      %p102 = por %p100, %p101
      %p103 = scmp.ne.s32.totalorder %s94, %s95
      %p104 = scmp.eq.s32.totalorder %s21, 0
      %p105 = por %p103, %p104
      %p106 = scmp.ne.s32.totalorder %s94, %s95
      %p107 = scmp.eq.s32.totalorder %s22, 1
      %p108 = por %p106, %p107
      %p110 = scmp.ne.s32.totalorder %s95, %s109
      %p111 = scmp.eq.s32.totalorder %s22, 0
      %p112 = por %p110, %p111
      %s114 = sadd.s32 %s113, 1
      %p117 = scmp.eq.s32.totalorder %s16, 1
      %p118 = scmp.ne.s32.totalorder %s113, %s115
      %p119 = scmp.eq.s32.totalorder %s16, 0
      %p120 = por %p118, %p119
      %p121 = scmp.ne.s32.totalorder %s113, %s115
      %p122 = scmp.eq.s32.totalorder %s21, 1
      %p123 = por %p121, %p122
      %p124 = scmp.ne.s32.totalorder %s115, %s116
      %p125 = scmp.eq.s32.totalorder %s21, 0
      %p126 = por %p124, %p125
      %p127 = scmp.ne.s32.totalorder %s115, %s116
      %p128 = scmp.eq.s32.totalorder %s22, 1
      %p129 = por %p127, %p128
      %p131 = scmp.ne.s32.totalorder %s116, %s130
      %p132 = scmp.eq.s32.totalorder %s22, 0
      %p133 = por %p131, %p132
      %s135 = sadd.s32 %s134, 1
      %p138 = scmp.eq.s32.totalorder %s16, 1
      %p139 = scmp.ne.s32.totalorder %s134, %s136
      %p140 = scmp.eq.s32.totalorder %s16, 0
      %p141 = por %p139, %p140
      %p142 = scmp.ne.s32.totalorder %s134, %s136
      %p143 = scmp.eq.s32.totalorder %s21, 1
      %p144 = por %p142, %p143
      %p145 = scmp.ne.s32.totalorder %s136, %s137
      %p146 = scmp.eq.s32.totalorder %s21, 0
      %p147 = por %p145, %p146
      %p148 = scmp.ne.s32.totalorder %s136, %s137
      %p149 = scmp.eq.s32.totalorder %s22, 1
      %p150 = por %p148, %p149
      %p152 = scmp.ne.s32.totalorder %s137, %s151
      %p153 = scmp.eq.s32.totalorder %s22, 0
      %p154 = por %p152, %p153
      %s156 = sadd.s32 %s155, 1
      %p159 = scmp.eq.s32.totalorder %s16, 1
      %p160 = scmp.ne.s32.totalorder %s155, %s157
      %p161 = scmp.eq.s32.totalorder %s16, 0
      %p162 = por %p160, %p161
      %p163 = scmp.ne.s32.totalorder %s155, %s157
      %p164 = scmp.eq.s32.totalorder %s21, 1
      %p165 = por %p163, %p164
      %p166 = scmp.ne.s32.totalorder %s157, %s158
      %p167 = scmp.eq.s32.totalorder %s21, 0
      %p168 = por %p166, %p167
      %p169 = scmp.ne.s32.totalorder %s157, %s158
      %p170 = scmp.eq.s32.totalorder %s22, 1
      %p171 = por %p169, %p170
      %p173 = scmp.ne.s32.totalorder %s158, %s172
      %p174 = scmp.eq.s32.totalorder %s22, 0
      %p175 = por %p173, %p174
      %s176 = ssub.s32 %s16, %s23
      %p177 = scmp.eq.s32.totalorder %s176, 0
      %s179 = sadd.s32 %s178, 1
      %s180 = scalar_select %p177, %s178, %s179
      %p183 = pneg %p177
      %p184 = scmp.eq.s32.totalorder %s16, 1
      %p185 = por %p183, %p184
      %p186 = scmp.ne.s32.totalorder %s178, %s181
      %p187 = scmp.eq.s32.totalorder %s16, 0
      %p188 = por %p186, %p187
      %p189 = scmp.ne.s32.totalorder %s178, %s181
      %p190 = scmp.eq.s32.totalorder %s21, 1
      %p191 = por %p189, %p190
      %p192 = scmp.ne.s32.totalorder %s181, %s182
      %p193 = scmp.eq.s32.totalorder %s21, 0
      %p194 = por %p192, %p193
      %p195 = scmp.ne.s32.totalorder %s181, %s182
      %p196 = scmp.eq.s32.totalorder %s22, 1
      %p197 = por %p195, %p196
      %p199 = scmp.ne.s32.totalorder %s182, %s198
      %p200 = scmp.eq.s32.totalorder %s22, 0
      %p201 = por %p199, %p200
      %p202 = scmp.le.s32.totalorder 1, %s16
      %p203 = scmp.lt.s32.totalorder %s16, 3
      %p204 = pnand %p202, %p203
      %p205 = pneg %p204
      // Predicated region
      $region9: #{tpu_custom_call.1} parent=5 // pred_check
        _
      $region10: #{tpu_custom_call.1} parent=5 // pred_check_branch
        %207 = sbr.rel (%p204) target = $region12
      $region11: #{tpu_custom_call.1} parent=5 // pred_region
        %s208 = ssub.s32 %s16, 1
        // Predicated region
        $region13: #{tpu_custom_call.1} parent=11 // pred_check
          %p209 = pneg %p63
        $region14: #{tpu_custom_call.1} parent=11 // pred_check_branch
          %211 = sbr.rel (%p209) target = $region16
        $region15: #{tpu_custom_call.1} parent=11 // pred_region
          _
        $region16: #{tpu_custom_call.1} parent=11 // pred_fallthru
          _
        // Predicated region
        $region17: #{tpu_custom_call.1} parent=11 // pred_check
          %p212 = pneg %p84
        $region18: #{tpu_custom_call.1} parent=11 // pred_check_branch
          %214 = sbr.rel (%p212) target = $region20
        $region19: #{tpu_custom_call.1} parent=11 // pred_region
          _
        $region20: #{tpu_custom_call.1} parent=11 // pred_fallthru
          _
        // Predicated region
        $region21: #{tpu_custom_call.1} parent=11 // pred_check
          %p215 = pneg %p105
        $region22: #{tpu_custom_call.1} parent=11 // pred_check_branch
          %217 = sbr.rel (%p215) target = $region24
        $region23: #{tpu_custom_call.1} parent=11 // pred_region
          _
        $region24: #{tpu_custom_call.1} parent=11 // pred_fallthru
          _
        // Predicated region
        $region25: #{tpu_custom_call.1} parent=11 // pred_check
          %p218 = pneg %p126
        $region26: #{tpu_custom_call.1} parent=11 // pred_check_branch
          %220 = sbr.rel (%p218) target = $region28
        $region27: #{tpu_custom_call.1} parent=11 // pred_region
          _
        $region28: #{tpu_custom_call.1} parent=11 // pred_fallthru
          _
        // Predicated region
        $region29: #{tpu_custom_call.1} parent=11 // pred_check
          %p221 = pneg %p147
        $region30: #{tpu_custom_call.1} parent=11 // pred_check_branch
          %223 = sbr.rel (%p221) target = $region32
        $region31: #{tpu_custom_call.1} parent=11 // pred_region
          _
        $region32: #{tpu_custom_call.1} parent=11 // pred_fallthru
          _
        // Predicated region
        $region33: #{tpu_custom_call.1} parent=11 // pred_check
          %p224 = pneg %p168
        $region34: #{tpu_custom_call.1} parent=11 // pred_check_branch
          %226 = sbr.rel (%p224) target = $region36
        $region35: #{tpu_custom_call.1} parent=11 // pred_region
          _
        $region36: #{tpu_custom_call.1} parent=11 // pred_fallthru
          _
      $region12: #{tpu_custom_call.1} parent=5 // pred_fallthru
        _
      %p227 = scmp.lt.s32.totalorder %s16, 2
      // Predicated region
      $region37: #{tpu_custom_call.1} parent=5 // pred_check
        %p228 = pneg %p227
      $region38: #{tpu_custom_call.1} parent=5 // pred_check_branch
        %230 = sbr.rel (%p228) target = $region40
      $region39: #{tpu_custom_call.1} parent=5 // pred_region
        // Predicated region
        $region41: #{tpu_custom_call.1} parent=39 // pred_check
          %p231 = pneg %p36
        $region42: #{tpu_custom_call.1} parent=39 // pred_check_branch
          %233 = sbr.rel (%p231) target = $region44
        $region43: #{tpu_custom_call.1} parent=39 // pred_region
          %p234 = scmp.lt.s32.totalorder %s16, 1
          %s235 = scalar_select %p234, %s16, 1
          %s236 = smul.addr %s235, 4
          %s237 = scalar_lea.vmem %s0, %s236
        $region44: #{tpu_custom_call.1} parent=39 // pred_fallthru
          _
      $region40: #{tpu_custom_call.1} parent=5 // pred_fallthru
        _
      %p238 = scmp.le.s32.totalorder 1, %s16
      %p239 = scmp.lt.s32.totalorder %s16, 3
      %p240 = pnand %p238, %p239
      %p241 = pneg %p240
      // Predicated region
      $region45: #{tpu_custom_call.1} parent=5 // pred_check
        _
      $region46: #{tpu_custom_call.1} parent=5 // pred_check_branch
        %243 = sbr.rel (%p240) target = $region48
      $region47: #{tpu_custom_call.1} parent=5 // pred_region
        %s244 = ssub.s32 %s16, 1
        %p245 = scmp.lt.s32.totalorder %s21, 1
        %s246 = scalar_select %p245, %s21, 1
        %s247 = smul.addr %s246, 4
        %s248 = scalar_lea.vmem %s0, %s247
        %p249 = pneg %p42
        %p250 = pneg %p39
        %p251 = pneg %p63
        %p252 = pneg %p60
        %p253 = pneg %p84
        %p254 = pneg %p81
        %p255 = pneg %p105
        %p256 = pneg %p102
        %p257 = pneg %p126
        %p258 = pneg %p123
        %p259 = pneg %p147
        %p260 = pneg %p144
        %p261 = pneg %p168
        %p262 = pneg %p165
        %p263 = pneg %p194
        %p264 = pneg %p191
        %s265 = sand.u32 %s181, 1
        %s266 = scalar_lea.sflag [#allocation3], %s265
        %s267 = sand.u32 %s181, 1
        %s268 = smul.addr %s267, 4
        %s269 = scalar_lea.vmem [#allocation2], %s268
        %p270 = scmp.lt.s32.totalorder %s21, 1
        %s271 = scalar_select %p270, %s21, 1
        %s272 = smul.addr %s271, 4
        %s273 = scalar_lea.vmem %s0, %s272
        %v274 = vld [vmem:[%s1] sm:$0xff]
        %v275 = vld [vmem:[%s1 + $0x8] sm:$0xff]
        %v276 = vld [vmem:[%s1 + $0x10] sm:$0xff]
        %v277 = vld [vmem:[%s1 + $0x18] sm:$0xff]
        %v278 = vld [vmem:[%s273] sm:$0xf]
        %v279 = vld [vmem:[%s2] sm:$0xff]
        %v280 = vld [vmem:[%s2 + $0x8] sm:$0xff]
        %v281 = vld [vmem:[%s2 + $0x10] sm:$0xff]
        %v282 = vld [vmem:[%s2 + $0x18] sm:$0xff]
        %284 = vset.pattern.permute.xlu0 0
        %285 = vperm.xlu0 %284, %v279
        %v286 = vpop.permute.xlu0 %285
        %289 = vset.pattern.permute.xlu0 0
        %290 = vperm.xlu0 %289, %v280
        %v291 = vpop.permute.xlu0 %290
        %294 = vset.pattern.permute.xlu0 0
        %295 = vperm.xlu0 %294, %v281
        %v296 = vpop.permute.xlu0 %295
        %299 = vset.pattern.permute.xlu0 0
        %300 = vperm.xlu0 %299, %v282
        %v301 = vpop.permute.xlu0 %300
        %vm303 = vcmask 31744
        %v305 = vsel %vm303, %v274, 0
        %v308 = vsel %vm303, %v275, 0
        %v311 = vsel %vm303, %v276, 0
        %v314 = vsel %vm303, %v277, 0
        %vm316 = vcmask 1043456
        %v318 = vsel %vm316, %v278, 0
        %320 = vmatprep.subr.mxu0 0.0
        %321 = vmatpush1.msra.mxu0 %v318
        %322 = vmatprep.subr.mxu0 0.0
        %323 = vmatpush1.msra.mxu0 0.0
        %324 = vmatprep.subr.mxu0 0.0
        %325 = vmatpush1.msra.mxu0 0.0
        %326 = vmatprep.subr.mxu0 0.0
        %327 = vmatpush1.msra.mxu0 0.0
        %328 = vmatprep.subr.mxu0 0.0
        %329 = vmatpush1.msra.mxu0 0.0
        %330 = vmatprep.subr.mxu0 0.0
        %331 = vmatpush1.msra.mxu0 0.0
        %332 = vmatprep.subr.mxu0 0.0
        %333 = vmatpush1.msra.mxu0 0.0
        %334 = vmatprep.subr.mxu0 0.0
        %335 = vmatpush1.msra.mxu0 0.0
        %336 = vmatprep.subr.mxu0 0.0
        %337 = vmatpush1.msra.mxu0 0.0
        %338 = vmatprep.subr.mxu0 0.0
        %339 = vmatpush1.msra.mxu0 0.0
        %340 = vmatprep.subr.mxu0 0.0
        %341 = vmatpush1.msra.mxu0 0.0
        %342 = vmatprep.subr.mxu0 0.0
        %343 = vmatpush1.msra.mxu0 0.0
        %344 = vmatprep.subr.mxu0 0.0
        %345 = vmatpush1.msra.mxu0 0.0
        %346 = vmatprep.subr.mxu0 0.0
        %347 = vmatpush1.msra.mxu0 0.0
        %348 = vmatprep.subr.mxu0 0.0
        %349 = vmatpush1.msra.mxu0 0.0
        %350 = vmatprep.subr.mxu0 0.0
        %351 = vmatpush1.msra.mxu0 0.0
        %352 = vmatprep.subr.mxu0 0.0
        %353 = vmatpush1.msra.mxu0 0.0
        %354 = vmatprep.subr.mxu0 0.0
        %355 = vmatpush1.msra.mxu0 0.0
        %356 = vmatprep.subr.mxu0 0.0
        %357 = vmatpush1.msra.mxu0 0.0
        %358 = vmatprep.subr.mxu0 0.0
        %359 = vmatpush1.msra.mxu0 0.0
        %360 = vmatprep.subr.mxu0 0.0
        %361 = vmatpush1.msra.mxu0 0.0
        %362 = vmatprep.subr.mxu0 0.0
        %363 = vmatpush1.msra.mxu0 0.0
        %364 = vmatprep.subr.mxu0 0.0
        %365 = vmatpush1.msra.mxu0 0.0
        %366 = vmatprep.subr.mxu0 0.0
        %367 = vmatpush1.msra.mxu0 0.0
        %368 = vmatprep.subr.mxu0 0.0
        %369 = vmatpush1.msra.mxu0 0.0
        %370 = vmatprep.subr.mxu0 0.0
        %371 = vmatpush1.msra.mxu0 0.0
        %372 = vmatprep.subr.mxu0 0.0
        %373 = vmatpush1.msra.mxu0 0.0
        %374 = vmatprep.subr.mxu0 0.0
        %375 = vmatpush1.msra.mxu0 0.0
        %376 = vmatprep.subr.mxu0 0.0
        %377 = vmatpush1.msra.mxu0 0.0
        %378 = vmatprep.subr.mxu0 0.0
        %379 = vmatpush1.msra.mxu0 0.0
        %380 = vmatprep.subr.mxu0 0.0
        %381 = vmatpush1.msra.mxu0 0.0
        %382 = vmatprep.subr.mxu0 0.0
        %383 = vmatpush1.msra.mxu0 0.0
        %384 = vmatprep.mubr.f32.mxu0 0.0
        %385 = vmatmul.mubr.f32.gmra.mrb[0].mxu0 %v305
        %v386 = vpop.f32.mrb[0].mxu0
        %v387 = vadd.f32 %v286, %v386
        %v388 = vpop.f32.mrb[0].mxu0
        %389 = vmatprep.mubr.f32.mxu0 0.0
        %390 = vmatmul.mubr.f32.gmra.mrb[0].mxu0 %v308
        %v391 = vpop.f32.mrb[0].mxu0
        %v392 = vadd.f32 %v291, %v391
        %v393 = vpop.f32.mrb[0].mxu0
        %394 = vmatprep.mubr.f32.mxu0 0.0
        %395 = vmatmul.mubr.f32.gmra.mrb[0].mxu0 %v311
        %v396 = vpop.f32.mrb[0].mxu0
        %v397 = vadd.f32 %v296, %v396
        %v398 = vpop.f32.mrb[0].mxu0
        %399 = vmatprep.mubr.f32.mxu0 0.0
        %400 = vmatmul.mubr.f32.gmra.mrb[0].mxu0 %v314
        %v401 = vpop.f32.mrb[0].mxu0
        %v402 = vadd.f32 %v301, %v401
        %v403 = vpop.f32.mrb[0].mxu0
        %404 = vdwg.mxu0
        %v405 = vxor.u32 %v387, 2147483648
        %v406 = vxor.u32 %v392, 2147483648
        %v407 = vxor.u32 %v397, 2147483648
        %v408 = vxor.u32 %v402, 2147483648
        %v409 = vmul.f32 %v405, 1.442695
        %v410 = vpow.pop %v409
        %v411 = vmul.f32 %v406, 1.442695
        %v412 = vpow.pop %v411
        %v413 = vmul.f32 %v407, 1.442695
        %v414 = vpow.pop %v413
        %v415 = vmul.f32 %v408, 1.442695
        %v416 = vpow.pop %v415
        %v417 = vadd.f32 %v410, 1.0
        %v418 = vadd.f32 %v412, 1.0
        %v419 = vadd.f32 %v414, 1.0
        %v420 = vadd.f32 %v416, 1.0
        %v421 = vrcp.pop %v417
        %v422 = vmul.f32 1.0, %v421
        %v423 = vrcp.pop %v418
        %v424 = vmul.f32 1.0, %v423
        %v425 = vrcp.pop %v419
        %v426 = vmul.f32 1.0, %v425
        %v427 = vrcp.pop %v420
        %v428 = vmul.f32 1.0, %v427
        %v429 = vmul.f32 %v387, %v422
        %v430 = vmul.f32 %v392, %v424
        %v431 = vmul.f32 %v397, %v426
        %v432 = vmul.f32 %v402, %v428
        %v433 = vld [vmem:[%s3] sm:$0xff]
        %v434 = vld [vmem:[%s3 + $0x8] sm:$0xff]
        %v435 = vld [vmem:[%s3 + $0x10] sm:$0xff]
        %v436 = vld [vmem:[%s3 + $0x18] sm:$0xff]
        %v437 = vld [vmem:[%s4] sm:$0xff]
        %v438 = vld [vmem:[%s4 + $0x8] sm:$0xff]
        %v439 = vld [vmem:[%s4 + $0x10] sm:$0xff]
        %v440 = vld [vmem:[%s4 + $0x18] sm:$0xff]
        %442 = vset.pattern.permute.xlu0 0
        %443 = vperm.xlu0 %442, %v437
        %v444 = vpop.permute.xlu0 %443
        %447 = vset.pattern.permute.xlu0 0
        %448 = vperm.xlu0 %447, %v438
        %v449 = vpop.permute.xlu0 %448
        %452 = vset.pattern.permute.xlu0 0
        %453 = vperm.xlu0 %452, %v439
        %v454 = vpop.permute.xlu0 %453
        %457 = vset.pattern.permute.xlu0 0
        %458 = vperm.xlu0 %457, %v440
        %v459 = vpop.permute.xlu0 %458
        %vm461 = vcmask 261120
        %v463 = vsel %vm461, %v433, 0
        %v466 = vsel %vm461, %v434, 0
        %v469 = vsel %vm461, %v435, 0
        %v472 = vsel %vm461, %v436, 0
        %474 = vmatprep.subr.mxu0 0.0
        %475 = vmatpush1.msra.mxu0 %v429
        %476 = vmatprep.subr.mxu0 0.0
        %477 = vmatpush1.msra.mxu0 %v430
        %478 = vmatprep.subr.mxu0 0.0
        %479 = vmatpush1.msra.mxu0 %v431
        %480 = vmatprep.subr.mxu0 0.0
        %481 = vmatpush1.msra.mxu0 %v432
        %482 = vmatprep.subr.mxu0 0.0
        %483 = vmatpush1.msra.mxu0 0.0
        %484 = vmatprep.subr.mxu0 0.0
        %485 = vmatpush1.msra.mxu0 0.0
        %486 = vmatprep.subr.mxu0 0.0
        %487 = vmatpush1.msra.mxu0 0.0
        %488 = vmatprep.subr.mxu0 0.0
        %489 = vmatpush1.msra.mxu0 0.0
        %490 = vmatprep.subr.mxu0 0.0
        %491 = vmatpush1.msra.mxu0 0.0
        %492 = vmatprep.subr.mxu0 0.0
        %493 = vmatpush1.msra.mxu0 0.0
        %494 = vmatprep.subr.mxu0 0.0
        %495 = vmatpush1.msra.mxu0 0.0
        %496 = vmatprep.subr.mxu0 0.0
        %497 = vmatpush1.msra.mxu0 0.0
        %498 = vmatprep.subr.mxu0 0.0
        %499 = vmatpush1.msra.mxu0 0.0
        %500 = vmatprep.subr.mxu0 0.0
        %501 = vmatpush1.msra.mxu0 0.0
        %502 = vmatprep.subr.mxu0 0.0
        %503 = vmatpush1.msra.mxu0 0.0
        %504 = vmatprep.subr.mxu0 0.0
        %505 = vmatpush1.msra.mxu0 0.0
        %506 = vmatprep.subr.mxu0 0.0
        %507 = vmatpush1.msra.mxu0 0.0
        %508 = vmatprep.subr.mxu0 0.0
        %509 = vmatpush1.msra.mxu0 0.0
        %510 = vmatprep.subr.mxu0 0.0
        %511 = vmatpush1.msra.mxu0 0.0
        %512 = vmatprep.subr.mxu0 0.0
        %513 = vmatpush1.msra.mxu0 0.0
        %514 = vmatprep.subr.mxu0 0.0
        %515 = vmatpush1.msra.mxu0 0.0
        %516 = vmatprep.subr.mxu0 0.0
        %517 = vmatpush1.msra.mxu0 0.0
        %518 = vmatprep.subr.mxu0 0.0
        %519 = vmatpush1.msra.mxu0 0.0
        %520 = vmatprep.subr.mxu0 0.0
        %521 = vmatpush1.msra.mxu0 0.0
        %522 = vmatprep.subr.mxu0 0.0
        %523 = vmatpush1.msra.mxu0 0.0
        %524 = vmatprep.subr.mxu0 0.0
        %525 = vmatpush1.msra.mxu0 0.0
        %526 = vmatprep.subr.mxu0 0.0
        %527 = vmatpush1.msra.mxu0 0.0
        %528 = vmatprep.subr.mxu0 0.0
        %529 = vmatpush1.msra.mxu0 0.0
        %530 = vmatprep.subr.mxu0 0.0
        %531 = vmatpush1.msra.mxu0 0.0
        %532 = vmatprep.subr.mxu0 0.0
        %533 = vmatpush1.msra.mxu0 0.0
        %534 = vmatprep.subr.mxu0 0.0
        %535 = vmatpush1.msra.mxu0 0.0
        %536 = vmatprep.subr.mxu0 0.0
        %537 = vmatpush1.msra.mxu0 0.0
        %538 = vmatprep.mubr.f32.mxu0 0.0
        %539 = vmatmul.mubr.f32.gmra.mrb[0].mxu0 %v463
        %v540 = vpop.f32.mrb[0].mxu0
        %v541 = vadd.f32 %v444, %v540
        %v542 = vpop.f32.mrb[0].mxu0
        %543 = vmatprep.mubr.f32.mxu0 0.0
        %544 = vmatmul.mubr.f32.gmra.mrb[0].mxu0 %v466
        %v545 = vpop.f32.mrb[0].mxu0
        %v546 = vadd.f32 %v449, %v545
        %v547 = vpop.f32.mrb[0].mxu0
        %548 = vmatprep.mubr.f32.mxu0 0.0
        %549 = vmatmul.mubr.f32.gmra.mrb[0].mxu0 %v469
        %v550 = vpop.f32.mrb[0].mxu0
        %v551 = vadd.f32 %v454, %v550
        %v552 = vpop.f32.mrb[0].mxu0
        %553 = vmatprep.mubr.f32.mxu0 0.0
        %554 = vmatmul.mubr.f32.gmra.mrb[0].mxu0 %v472
        %v555 = vpop.f32.mrb[0].mxu0
        %v556 = vadd.f32 %v459, %v555
        %v557 = vpop.f32.mrb[0].mxu0
        %558 = vdwg.mxu0
        %v559 = vxor.u32 %v541, 2147483648
        %v560 = vxor.u32 %v546, 2147483648
        %v561 = vxor.u32 %v551, 2147483648
        %v562 = vxor.u32 %v556, 2147483648
        %v563 = vmul.f32 %v559, 1.442695
        %v564 = vpow.pop %v563
        %v565 = vmul.f32 %v560, 1.442695
        %v566 = vpow.pop %v565
        %v567 = vmul.f32 %v561, 1.442695
        %v568 = vpow.pop %v567
        %v569 = vmul.f32 %v562, 1.442695
        %v570 = vpow.pop %v569
        %v571 = vadd.f32 %v564, 1.0
        %v572 = vadd.f32 %v566, 1.0
        %v573 = vadd.f32 %v568, 1.0
        %v574 = vadd.f32 %v570, 1.0
        %v575 = vrcp.pop %v571
        %v576 = vmul.f32 1.0, %v575
        %v577 = vrcp.pop %v572
        %v578 = vmul.f32 1.0, %v577
        %v579 = vrcp.pop %v573
        %v580 = vmul.f32 1.0, %v579
        %v581 = vrcp.pop %v574
        %v582 = vmul.f32 1.0, %v581
        %v583 = vmul.f32 %v541, %v576
        %v584 = vmul.f32 %v546, %v578
        %v585 = vmul.f32 %v551, %v580
        %v586 = vmul.f32 %v556, %v582
        %s587 = scalar_lea.vmem %s3, 32
        %v588 = vld [vmem:[%s587] sm:$0xff]
        %v589 = vld [vmem:[%s587 + $0x8] sm:$0xff]
        %v590 = vld [vmem:[%s587 + $0x10] sm:$0xff]
        %v591 = vld [vmem:[%s587 + $0x18] sm:$0xff]
        %s592 = scalar_lea.vmem %s4, 32
        %v593 = vld [vmem:[%s592] sm:$0xff]
        %v594 = vld [vmem:[%s592 + $0x8] sm:$0xff]
        %v595 = vld [vmem:[%s592 + $0x10] sm:$0xff]
        %v596 = vld [vmem:[%s592 + $0x18] sm:$0xff]
        %598 = vset.pattern.permute.xlu0 0
        %599 = vperm.xlu0 %598, %v593
        %v600 = vpop.permute.xlu0 %599
        %603 = vset.pattern.permute.xlu0 0
        %604 = vperm.xlu0 %603, %v594
        %v605 = vpop.permute.xlu0 %604
        %608 = vset.pattern.permute.xlu0 0
        %609 = vperm.xlu0 %608, %v595
        %v610 = vpop.permute.xlu0 %609
        %613 = vset.pattern.permute.xlu0 0
        %614 = vperm.xlu0 %613, %v596
        %v615 = vpop.permute.xlu0 %614
        %v618 = vsel %vm461, %v588, 0
        %v621 = vsel %vm461, %v589, 0
        %v624 = vsel %vm461, %v590, 0
        %v627 = vsel %vm461, %v591, 0
        %629 = vmatprep.subr.mxu0 0.0
        %630 = vmatpush1.msra.mxu0 %v583
        %631 = vmatprep.subr.mxu0 0.0
        %632 = vmatpush1.msra.mxu0 %v584
        %633 = vmatprep.subr.mxu0 0.0
        %634 = vmatpush1.msra.mxu0 %v585
        %635 = vmatprep.subr.mxu0 0.0
        %636 = vmatpush1.msra.mxu0 %v586
        %637 = vmatprep.subr.mxu0 0.0
        %638 = vmatpush1.msra.mxu0 0.0
        %639 = vmatprep.subr.mxu0 0.0
        %640 = vmatpush1.msra.mxu0 0.0
        %641 = vmatprep.subr.mxu0 0.0
        %642 = vmatpush1.msra.mxu0 0.0
        %643 = vmatprep.subr.mxu0 0.0
        %644 = vmatpush1.msra.mxu0 0.0
        %645 = vmatprep.subr.mxu0 0.0
        %646 = vmatpush1.msra.mxu0 0.0
        %647 = vmatprep.subr.mxu0 0.0
        %648 = vmatpush1.msra.mxu0 0.0
        %649 = vmatprep.subr.mxu0 0.0
        %650 = vmatpush1.msra.mxu0 0.0
        %651 = vmatprep.subr.mxu0 0.0
        %652 = vmatpush1.msra.mxu0 0.0
        %653 = vmatprep.subr.mxu0 0.0
        %654 = vmatpush1.msra.mxu0 0.0
        %655 = vmatprep.subr.mxu0 0.0
        %656 = vmatpush1.msra.mxu0 0.0
        %657 = vmatprep.subr.mxu0 0.0
        %658 = vmatpush1.msra.mxu0 0.0
        %659 = vmatprep.subr.mxu0 0.0
        %660 = vmatpush1.msra.mxu0 0.0
        %661 = vmatprep.subr.mxu0 0.0
        %662 = vmatpush1.msra.mxu0 0.0
        %663 = vmatprep.subr.mxu0 0.0
        %664 = vmatpush1.msra.mxu0 0.0
        %665 = vmatprep.subr.mxu0 0.0
        %666 = vmatpush1.msra.mxu0 0.0
        %667 = vmatprep.subr.mxu0 0.0
        %668 = vmatpush1.msra.mxu0 0.0
        %669 = vmatprep.subr.mxu0 0.0
        %670 = vmatpush1.msra.mxu0 0.0
        %671 = vmatprep.subr.mxu0 0.0
        %672 = vmatpush1.msra.mxu0 0.0
        %673 = vmatprep.subr.mxu0 0.0
        %674 = vmatpush1.msra.mxu0 0.0
        %675 = vmatprep.subr.mxu0 0.0
        %676 = vmatpush1.msra.mxu0 0.0
        %677 = vmatprep.subr.mxu0 0.0
        %678 = vmatpush1.msra.mxu0 0.0
        %679 = vmatprep.subr.mxu0 0.0
        %680 = vmatpush1.msra.mxu0 0.0
        %681 = vmatprep.subr.mxu0 0.0
        %682 = vmatpush1.msra.mxu0 0.0
        %683 = vmatprep.subr.mxu0 0.0
        %684 = vmatpush1.msra.mxu0 0.0
        %685 = vmatprep.subr.mxu0 0.0
        %686 = vmatpush1.msra.mxu0 0.0
        %687 = vmatprep.subr.mxu0 0.0
        %688 = vmatpush1.msra.mxu0 0.0
        %689 = vmatprep.subr.mxu0 0.0
        %690 = vmatpush1.msra.mxu0 0.0
        %691 = vmatprep.subr.mxu0 0.0
        %692 = vmatpush1.msra.mxu0 0.0
        %693 = vmatprep.mubr.f32.mxu0 0.0
        %694 = vmatmul.mubr.f32.gmra.mrb[0].mxu0 %v618
        %v695 = vpop.f32.mrb[0].mxu0
        %v696 = vadd.f32 %v600, %v695
        %v697 = vpop.f32.mrb[0].mxu0
        %698 = vmatprep.mubr.f32.mxu0 0.0
        %699 = vmatmul.mubr.f32.gmra.mrb[0].mxu0 %v621
        %v700 = vpop.f32.mrb[0].mxu0
        %v701 = vadd.f32 %v605, %v700
        %v702 = vpop.f32.mrb[0].mxu0
        %703 = vmatprep.mubr.f32.mxu0 0.0
        %704 = vmatmul.mubr.f32.gmra.mrb[0].mxu0 %v624
        %v705 = vpop.f32.mrb[0].mxu0
        %v706 = vadd.f32 %v610, %v705
        %v707 = vpop.f32.mrb[0].mxu0
        %708 = vmatprep.mubr.f32.mxu0 0.0
        %709 = vmatmul.mubr.f32.gmra.mrb[0].mxu0 %v627
        %v710 = vpop.f32.mrb[0].mxu0
        %v711 = vadd.f32 %v615, %v710
        %v712 = vpop.f32.mrb[0].mxu0
        %713 = vdwg.mxu0
        %v714 = vxor.u32 %v696, 2147483648
        %v715 = vxor.u32 %v701, 2147483648
        %v716 = vxor.u32 %v706, 2147483648
        %v717 = vxor.u32 %v711, 2147483648
        %v718 = vmul.f32 %v714, 1.442695
        %v719 = vpow.pop %v718
        %v720 = vmul.f32 %v715, 1.442695
        %v721 = vpow.pop %v720
        %v722 = vmul.f32 %v716, 1.442695
        %v723 = vpow.pop %v722
        %v724 = vmul.f32 %v717, 1.442695
        %v725 = vpow.pop %v724
        %v726 = vadd.f32 %v719, 1.0
        %v727 = vadd.f32 %v721, 1.0
        %v728 = vadd.f32 %v723, 1.0
        %v729 = vadd.f32 %v725, 1.0
        %v730 = vrcp.pop %v726
        %v731 = vmul.f32 1.0, %v730
        %v732 = vrcp.pop %v727
        %v733 = vmul.f32 1.0, %v732
        %v734 = vrcp.pop %v728
        %v735 = vmul.f32 1.0, %v734
        %v736 = vrcp.pop %v729
        %v737 = vmul.f32 1.0, %v736
        %v738 = vmul.f32 %v696, %v731
        %v739 = vmul.f32 %v701, %v733
        %v740 = vmul.f32 %v706, %v735
        %v741 = vmul.f32 %v711, %v737
        %v742 = vld [vmem:[%s5] sm:$0x7]
        %v743 = vld [vmem:[%s6] sm:$0x7]
        %745 = vset.pattern.permute.xlu0 0
        %746 = vperm.xlu0 %745, %v743
        %v747 = vpop.permute.xlu0 %746
        %v750 = vsel %vm461, %v742, 0
        %752 = vmatprep.subr.mxu0 0.0
        %753 = vmatpush1.msra.mxu0 %v738
        %754 = vmatprep.subr.mxu0 0.0
        %755 = vmatpush1.msra.mxu0 %v739
        %756 = vmatprep.subr.mxu0 0.0
        %757 = vmatpush1.msra.mxu0 %v740
        %758 = vmatprep.subr.mxu0 0.0
        %759 = vmatpush1.msra.mxu0 %v741
        %760 = vmatprep.subr.mxu0 0.0
        %761 = vmatpush1.msra.mxu0 0.0
        %762 = vmatprep.subr.mxu0 0.0
        %763 = vmatpush1.msra.mxu0 0.0
        %764 = vmatprep.subr.mxu0 0.0
        %765 = vmatpush1.msra.mxu0 0.0
        %766 = vmatprep.subr.mxu0 0.0
        %767 = vmatpush1.msra.mxu0 0.0
        %768 = vmatprep.subr.mxu0 0.0
        %769 = vmatpush1.msra.mxu0 0.0
        %770 = vmatprep.subr.mxu0 0.0
        %771 = vmatpush1.msra.mxu0 0.0
        %772 = vmatprep.subr.mxu0 0.0
        %773 = vmatpush1.msra.mxu0 0.0
        %774 = vmatprep.subr.mxu0 0.0
        %775 = vmatpush1.msra.mxu0 0.0
        %776 = vmatprep.subr.mxu0 0.0
        %777 = vmatpush1.msra.mxu0 0.0
        %778 = vmatprep.subr.mxu0 0.0
        %779 = vmatpush1.msra.mxu0 0.0
        %780 = vmatprep.subr.mxu0 0.0
        %781 = vmatpush1.msra.mxu0 0.0
        %782 = vmatprep.subr.mxu0 0.0
        %783 = vmatpush1.msra.mxu0 0.0
        %784 = vmatprep.subr.mxu0 0.0
        %785 = vmatpush1.msra.mxu0 0.0
        %786 = vmatprep.subr.mxu0 0.0
        %787 = vmatpush1.msra.mxu0 0.0
        %788 = vmatprep.subr.mxu0 0.0
        %789 = vmatpush1.msra.mxu0 0.0
        %790 = vmatprep.subr.mxu0 0.0
        %791 = vmatpush1.msra.mxu0 0.0
        %792 = vmatprep.subr.mxu0 0.0
        %793 = vmatpush1.msra.mxu0 0.0
        %794 = vmatprep.subr.mxu0 0.0
        %795 = vmatpush1.msra.mxu0 0.0
        %796 = vmatprep.subr.mxu0 0.0
        %797 = vmatpush1.msra.mxu0 0.0
        %798 = vmatprep.subr.mxu0 0.0
        %799 = vmatpush1.msra.mxu0 0.0
        %800 = vmatprep.subr.mxu0 0.0
        %801 = vmatpush1.msra.mxu0 0.0
        %802 = vmatprep.subr.mxu0 0.0
        %803 = vmatpush1.msra.mxu0 0.0
        %804 = vmatprep.subr.mxu0 0.0
        %805 = vmatpush1.msra.mxu0 0.0
        %806 = vmatprep.subr.mxu0 0.0
        %807 = vmatpush1.msra.mxu0 0.0
        %808 = vmatprep.subr.mxu0 0.0
        %809 = vmatpush1.msra.mxu0 0.0
        %810 = vmatprep.subr.mxu0 0.0
        %811 = vmatpush1.msra.mxu0 0.0
        %812 = vmatprep.subr.mxu0 0.0
        %813 = vmatpush1.msra.mxu0 0.0
        %814 = vmatprep.subr.mxu0 0.0
        %815 = vmatpush1.msra.mxu0 0.0
        %816 = vmatprep.mubr.f32.mxu0 0.0
        %817 = vmatmul.mubr.f32.gmra.mrb[0].mxu0 %v750
        %v818 = vpop.f32.mrb[0].mxu0
        %v819 = vadd.f32 %v747, %v818
        %v820 = vpop.f32.mrb[0].mxu0
        %821 = vdwg.mxu0
        %822 = vst [vmem:[%s269] sm:$0x7] %v819
        %s823 = sand.u32 %s181, 1
        %s824 = scalar_lea.sflag [#allocation3], %s823
        %s825 = sand.u32 %s181, 1
        %s826 = smul.addr %s825, 4
        %s827 = scalar_lea.vmem [#allocation2], %s826
        // Predicated region
        $region49: #{tpu_custom_call.1} parent=47 // pred_check
          %p828 = pneg %p191
        $region50: #{tpu_custom_call.1} parent=47 // pred_check_branch
          %830 = sbr.rel (%p828) target = $region52
        $region51: #{tpu_custom_call.1} parent=47 // pred_region
          %s832 = ssub.s32 64, 64
          %833 = vsyncadd %s824, %s832
          %s834 = smul.addr %s21, 64
          %s835 = scalar_lea.hbm %s7, %s834
          %s837 = sshll.u32 %s827, 4
          %s838 = int_to_ptr.vmem [resolvable:$true] %s837
          %840 = dma.vmem_to_hbm [thread:$0]  %s838, 64, %s835, %s824
        $region52: #{tpu_custom_call.1} parent=47 // pred_fallthru
          _
      $region48: #{tpu_custom_call.1} parent=5 // pred_fallthru
        _
      %p841 = scmp.le.s32.totalorder 2, %s16
      // Predicated region
      $region53: #{tpu_custom_call.1} parent=5 // pred_check
        %p842 = pneg %p841
      $region54: #{tpu_custom_call.1} parent=5 // pred_check_branch
        %844 = sbr.rel (%p842) target = $region56
      $region55: #{tpu_custom_call.1} parent=5 // pred_region
        %s845 = ssub.s32 %s16, 2
        // Predicated region
        $region57: #{tpu_custom_call.1} parent=55 // pred_check
          %p846 = pneg %p197
        $region58: #{tpu_custom_call.1} parent=55 // pred_check_branch
          %848 = sbr.rel (%p846) target = $region60
        $region59: #{tpu_custom_call.1} parent=55 // pred_region
          %s849 = sand.u32 %s182, 1
          %s850 = scalar_lea.sflag [#allocation3], %s849
          %s851 = sand.u32 %s182, 1
          %s852 = smul.addr %s851, 4
          %s853 = scalar_lea.vmem [#allocation2], %s852
          %854 = dma.done %s850, 64
        $region60: #{tpu_custom_call.1} parent=55 // pred_fallthru
          _
      $region56: #{tpu_custom_call.1} parent=5 // pred_fallthru
        _
    $region6: #{tpu_custom_call.1} parent=1 // loop_footer
      %s20 = sadd.s32 1, %s16
    $region7: #{tpu_custom_call.1} parent=1 // loop_footer_branch
      %15 = sbr.rel target = $region3
    $region8: #{tpu_custom_call.1} parent=1 // loop_exit
      _
    %855 = vsyncpa [#allocation3], 1
    %s856 = scalar_lea.sflag [#allocation3], 1
    %857 = vsyncpa %s856, 1

</llo_original>
